<compile_context>
chip_gen: v5e
topology: v5e:2x2
jax: 0.10.0
libtpu: 0.0.40
codegen_flags: <defaults>
</compile_context>

<pallas_src>
import functools
import math

import jax
import jax.numpy as jnp
from jax.experimental import pallas as pl
from jax.experimental.pallas import tpu as pltpu


def _round_up(x, m):
    return ((x + m - 1) // m) * m


def _cdiv(a, b):
    return -(-a // b)


def _make_gfk_kernel(k_levels, f, h_pad, nclass, n_mid,
                     first_residual, last_residual, compute_dtype):
    """Fused Combination + MLP kernel for a fixed (static) configuration."""

    def kernel(x_ref, cw_ref, *rest):
        w_first_ref = rest[0]
        w_mid_refs = rest[1:1 + n_mid]
        w_last_ref = rest[1 + n_mid]
        out_ref = rest[2 + n_mid]

        # ---- Combination (eval-mode dropout == identity).
        # x tile is (TB, K*F) bf16 -> dense (8,128) layout; the K-level
        # reduction is K elementwise multiply-adds on the VPU (no XLU).
        # TODO(synk): training-mode dropout (Combination/MLP) not implemented.
        x = x_ref[...].astype(jnp.float32)                    # (TB, K*F)
        cw = cw_ref[...]                                      # (1,  K*F) f32
        h = x[:, 0:f] * cw[:, 0:f]
        for k in range(1, k_levels):
            h = h + x[:, k * f:(k + 1) * f] * cw[:, k * f:(k + 1) * f]

        # ---- Dense(nfeat, nhidden) [+ residual iff nfeat == nhidden], ReLU.
        # TODO(synk): bias='bn' (BatchNorm1d) path not implemented; 'none' only.
        z = jnp.dot(h.astype(compute_dtype), w_first_ref[...],
                    preferred_element_type=jnp.float32)       # (TB, Hp) f32
        if first_residual:
            if h_pad > f:
                h = jnp.concatenate(
                    [h, jnp.zeros((h.shape[0], h_pad - f), h.dtype)], axis=1)
            z = z + h
        h = jnp.maximum(z, 0.0)

        # ---- middle Dense(nhidden, nhidden): residual always, then ReLU.
        for w_ref in w_mid_refs:
            z = jnp.dot(h.astype(compute_dtype), w_ref[...],
                        preferred_element_type=jnp.float32)
            h = jnp.maximum(z + h, 0.0)

        # ---- final Dense(nhidden, nclass): no activation, unpadded lane dim.
        z = jnp.dot(h.astype(compute_dtype), w_last_ref[...],
                    preferred_element_type=jnp.float32)       # (TB, nclass)
        if last_residual:
            z = z + h[:, :nclass]
        out_ref[...] = z.astype(out_ref.dtype)

    return kernel


def prepare_params(params, *, nfeat, nhidden, nclass, compute_dtype=jnp.bfloat16):
    """One-time weight prep (do NOT call per forward): cast to bf16 and pad the
    hidden dim to a 128-lane multiple.  The feature dim (W0 rows) and the class
    dim (W_last cols) stay UNPADDED so x and the output use full-extent blocks."""
    h_pad = _round_up(max(nhidden, 128), 128)
    k_levels = params["comb_w"].shape[1]

    def pad_cast(w, rows, cols):
        buf = jnp.zeros((rows, cols), compute_dtype)
        return buf.at[:w.shape[0], :w.shape[1]].set(w.astype(compute_dtype))

    return {
        "comb_w": params["comb_w"].reshape(1, k_levels * nfeat).astype(jnp.float32),
        "w_first": pad_cast(params["w_first"], nfeat, h_pad),        # (F,  Hp)
        "w_mid": [pad_cast(w, h_pad, h_pad) for w in params["w_mid"]],
        "w_last": pad_cast(params["w_last"], h_pad, nclass),         # (Hp, C)
    }


def gfk_forward(x, prepared, *, nfeat, nhidden, nclass,
                block_rows=512, compute_dtype=jnp.bfloat16,
                single_buffer_weights=True):
    """x: (N, K, nfeat). prepared: output of prepare_params. Returns (N, nclass) f32."""
    n, k_levels, f = x.shape
    assert f == nfeat
    kf = k_levels * f

    cw = prepared["comb_w"]
    w_first = prepared["w_first"]
    w_mid = list(prepared["w_mid"])
    w_last = prepared["w_last"]
    h_pad = w_first.shape[1]
    n_mid = len(w_mid)
    assert w_first.shape[0] == f
    assert w_last.shape == (h_pad, nclass)
    assert cw.shape == (1, kf)

    # Residual rules come from the ORIGINAL torch Dense dims.
    first_residual = (nfeat == nhidden)
    last_residual = (nhidden == nclass)

    # Single cheap pass over x: contiguous reshape + bf16 cast (halves HBM read).
    x2 = x.reshape(n, kf).astype(compute_dtype)

    # Remainder-aware row tiling; >= 2 grid steps whenever possible so the
    # "parallel" axis actually feeds both v7x TensorCores.
    n8 = _round_up(n, 8)
    tiles = max(1 if n8 <= 8 else 2, _cdiv(n8, block_rows))
    tb = _round_up(_cdiv(n8, tiles), 8)
    n_pad = tb * tiles
    if n_pad != n:
        x2 = jnp.pad(x2, ((0, n_pad - n), (0, 0)))

    kernel = _make_gfk_kernel(k_levels, f, h_pad, nclass, n_mid,
                              first_residual, last_residual, compute_dtype)

    # Weights never change across grid steps -> constant index_map (stay VMEM
    # resident, no re-DMA) and single-buffered to halve their VMEM footprint.
    resident = dict(pipeline_mode=pl.Buffered(1)) if single_buffer_weights else {}
    const2d = lambda i: (0, 0)
    in_specs = (
        [pl.BlockSpec((tb, kf), lambda i: (i, 0)),                        # x tile (streamed)
         pl.BlockSpec((1, kf), const2d, **resident),                      # comb weight
         pl.BlockSpec((f, h_pad), const2d, **resident)]                   # W0
        + [pl.BlockSpec((h_pad, h_pad), const2d, **resident) for _ in range(n_mid)]
        + [pl.BlockSpec((h_pad, nclass), const2d, **resident)]            # W_last
    )
    out_spec = pl.BlockSpec((tb, nclass), lambda i: (i, 0))               # unpadded lanes

    # Explicit VMEM budget: 2x x-tile + 2x out-tile + (single-buffered) weights,
    # generous headroom, capped at 64 MiB (v7x physical VMEM per TensorCore).
    itemsize = jnp.dtype(compute_dtype).itemsize
    weight_vmem = ((w_first.size + sum(w.size for w in w_mid) + w_last.size)
                   * itemsize + cw.size * 4)
    x_tile_vmem = 2 * tb * _round_up(kf, 128) * itemsize
    out_tile_vmem = 2 * tb * _round_up(nclass, 128) * 4
    vmem_limit = int(min(max(2 * (weight_vmem + x_tile_vmem + out_tile_vmem),
                             32 * 1024 * 1024), 64 * 1024 * 1024))

    flops = (2 * n_pad * (f * h_pad + n_mid * h_pad * h_pad + h_pad * nclass)
             + 2 * n_pad * kf)
    bytes_accessed = x2.size * itemsize + weight_vmem + n_pad * nclass * 4

    out = pl.pallas_call(
        kernel,
        out_shape=jax.ShapeDtypeStruct((n_pad, nclass), jnp.float32),
        grid=(tiles,),
        in_specs=in_specs,
        out_specs=out_spec,
        compiler_params=pltpu.CompilerParams(
            dimension_semantics=("parallel",),
            vmem_limit_bytes=vmem_limit),
        cost_estimate=pl.CostEstimate(flops=flops, transcendentals=0,
                                      bytes_accessed=bytes_accessed),
    )(x2, cw, w_first, *w_mid, w_last)

    return out if n_pad == n else out[:n]


def init_params(key, level, nfeat, nlayers, nhidden, nclass):
    """Matches torch inits: Combination -> constant 1/K; Dense -> U(-1/sqrt(out), 1/sqrt(out))."""
    assert nlayers >= 2
    k_levels = level + 1
    keys = jax.random.split(key, nlayers)

    def dense_w(k, fan_in, fan_out):
        stdv = 1.0 / math.sqrt(fan_out)          # torch: 1/sqrt(weight.size(1))
        return jax.random.uniform(k, (fan_in, fan_out), jnp.float32, -stdv, stdv)

    return {
        # np.random.uniform(bound, bound, ...) is degenerate -> constant 1/K.
        "comb_w": jnp.full((1, k_levels, nfeat), 1.0 / k_levels, jnp.float32),
        "w_first": dense_w(keys[0], nfeat, nhidden),
        "w_mid": [dense_w(keys[1 + i], nhidden, nhidden)
                  for i in range(nlayers - 2)],
        "w_last": dense_w(keys[nlayers - 1], nhidden, nclass),
    }


def gfk_reference(x, params, *, nfeat, nhidden, nclass):
    """Independent plain-JAX (f32) reference of the eval-mode torch forward."""
    h = jnp.sum(x.astype(jnp.float32) * params["comb_w"], axis=1)
    z = h @ params["w_first"]
    if nfeat == nhidden:
        z = z + h
    h = jnp.maximum(z, 0.0)
    for w in params["w_mid"]:
        h = jnp.maximum(h @ w + h, 0.0)
    z = h @ params["w_last"]
    if nhidden == nclass:
        z = z + h
    return z


if __name__ == "__main__":
    LEVEL, NFEAT, NLAYERS, NHIDDEN, NCLASS = 3, 32, 3, 64, 8
    N = 16                                   # rows (graph nodes)

    key = jax.random.PRNGKey(0)
    k_x, k_p = jax.random.split(key)
    x = jax.random.normal(k_x, (N, LEVEL + 1, NFEAT), jnp.float32)
    params = init_params(k_p, LEVEL, NFEAT, NLAYERS, NHIDDEN, NCLASS)
    prepared = prepare_params(params, nfeat=NFEAT, nhidden=NHIDDEN, nclass=NCLASS)

    fwd = jax.jit(functools.partial(
        gfk_forward, nfeat=NFEAT, nhidden=NHIDDEN, nclass=NCLASS))
    try:
        out = jax.block_until_ready(fwd(x, prepared))
    except Exception:
        # Fallback if this JAX build rejects pl.Buffered(1) on resident weights
        # (default double-buffering; everything else identical).
        fwd = jax.jit(functools.partial(
            gfk_forward, nfeat=NFEAT, nhidden=NHIDDEN, nclass=NCLASS,
            single_buffer_weights=False))
        out = jax.block_until_ready(fwd(x, prepared))

    ref = jax.block_until_ready(
        gfk_reference(x, params, nfeat=NFEAT, nhidden=NHIDDEN, nclass=NCLASS))
    assert out.shape == (N, NCLASS)
    # bf16 x / matmul operands with f32 accumulation -> loose-ish tolerance.
    assert jnp.allclose(out, ref, atol=2e-2, rtol=2e-2), "mismatch vs reference"

    print("KERNEL_OK")
</pallas_src>

<mosaic_0001>
module attributes {stable_mosaic.version = 11 : i64} {
  func.func @kernel(%arg0: i32, %arg1: memref<8x128xbf16, #tpu.memory_space<vmem>>, %arg2: memref<1x128xf32, #tpu.memory_space<vmem>>, %arg3: memref<32x128xbf16, #tpu.memory_space<vmem>>, %arg4: memref<128x128xbf16, #tpu.memory_space<vmem>>, %arg5: memref<128x8xbf16, #tpu.memory_space<vmem>>, %arg6: memref<8x8xf32, #tpu.memory_space<vmem>>) attributes {dimension_semantics = [#tpu.dimension_semantics<parallel>], iteration_bounds = array<i64: 2>, scalar_prefetch = 0 : i64, scratch_operands = 0 : i64, tpu.core_type = #tpu.core_type<tc>, window_params = [{transform_indices = @transform_0, window_bounds = array<i64: 8, 128>}, {pipeline_mode = #tpu.pipeline_mode<synchronous>, transform_indices = @transform_1, window_bounds = array<i64: 1, 128>}, {pipeline_mode = #tpu.pipeline_mode<synchronous>, transform_indices = @transform_2, window_bounds = array<i64: 32, 128>}, {pipeline_mode = #tpu.pipeline_mode<synchronous>, transform_indices = @transform_3, window_bounds = array<i64: 128, 128>}, {pipeline_mode = #tpu.pipeline_mode<synchronous>, transform_indices = @transform_4, window_bounds = array<i64: 128, 8>}, {transform_indices = @transform_5, window_bounds = array<i64: 8, 8>}]} {
    %c0 = arith.constant 0 : index
    %c0_0 = arith.constant 0 : index
    %0 = vector.load %arg1[%c0, %c0_0] : memref<8x128xbf16, #tpu.memory_space<vmem>>, vector<8x128xbf16>
    %1 = arith.extf %0 : vector<8x128xbf16> to vector<8x128xf32>
    %c0_1 = arith.constant 0 : index
    %c0_2 = arith.constant 0 : index
    %2 = vector.load %arg2[%c0_1, %c0_2] : memref<1x128xf32, #tpu.memory_space<vmem>>, vector<1x128xf32>
    %3 = vector.extract_strided_slice %1 {offsets = [0, 0], sizes = [8, 32], strides = [1, 1]} : vector<8x128xf32> to vector<8x32xf32>
    %4 = vector.extract_strided_slice %2 {offsets = [0, 0], sizes = [1, 32], strides = [1, 1]} : vector<1x128xf32> to vector<1x32xf32>
    %5 = vector.broadcast %4 : vector<1x32xf32> to vector<8x32xf32>
    %6 = arith.mulf %3, %5 : vector<8x32xf32>
    %7 = vector.extract_strided_slice %1 {offsets = [0, 32], sizes = [8, 32], strides = [1, 1]} : vector<8x128xf32> to vector<8x32xf32>
    %8 = vector.extract_strided_slice %2 {offsets = [0, 32], sizes = [1, 32], strides = [1, 1]} : vector<1x128xf32> to vector<1x32xf32>
    %9 = vector.broadcast %8 : vector<1x32xf32> to vector<8x32xf32>
    %10 = arith.mulf %7, %9 : vector<8x32xf32>
    %11 = arith.addf %6, %10 : vector<8x32xf32>
    %12 = vector.extract_strided_slice %1 {offsets = [0, 64], sizes = [8, 32], strides = [1, 1]} : vector<8x128xf32> to vector<8x32xf32>
    %13 = vector.extract_strided_slice %2 {offsets = [0, 64], sizes = [1, 32], strides = [1, 1]} : vector<1x128xf32> to vector<1x32xf32>
    %14 = vector.broadcast %13 : vector<1x32xf32> to vector<8x32xf32>
    %15 = arith.mulf %12, %14 : vector<8x32xf32>
    %16 = arith.addf %11, %15 : vector<8x32xf32>
    %17 = vector.extract_strided_slice %1 {offsets = [0, 96], sizes = [8, 32], strides = [1, 1]} : vector<8x128xf32> to vector<8x32xf32>
    %18 = vector.extract_strided_slice %2 {offsets = [0, 96], sizes = [1, 32], strides = [1, 1]} : vector<1x128xf32> to vector<1x32xf32>
    %19 = vector.broadcast %18 : vector<1x32xf32> to vector<8x32xf32>
    %20 = arith.mulf %17, %19 : vector<8x32xf32>
    %21 = arith.addf %16, %20 : vector<8x32xf32>
    %22 = arith.truncf %21 : vector<8x32xf32> to vector<8x32xbf16>
    %c0_3 = arith.constant 0 : index
    %c0_4 = arith.constant 0 : index
    %23 = vector.load %arg3[%c0_3, %c0_4] : memref<32x128xbf16, #tpu.memory_space<vmem>>, vector<32x128xbf16>
    %cst = arith.constant dense<0.000000e+00> : vector<8x128xf32>
    %24 = tpu.matmul %22, %23, %cst {dimension_numbers = #tpu.dot_dimension_numbers<[1], [0], [0], [1], [0, 0, 1, 1], [], []>} : vector<8x32xbf16>, vector<32x128xbf16>, vector<8x128xf32> -> vector<8x128xf32>
    %cst_5 = arith.constant 0.000000e+00 : f32
    %25 = vector.broadcast %cst_5 : f32 to vector<8x128xf32>
    %26 = arith.maximumf %24, %25 : vector<8x128xf32>
    %27 = arith.truncf %26 : vector<8x128xf32> to vector<8x128xbf16>
    %c0_6 = arith.constant 0 : index
    %c0_7 = arith.constant 0 : index
    %28 = vector.load %arg4[%c0_6, %c0_7] : memref<128x128xbf16, #tpu.memory_space<vmem>>, vector<128x128xbf16>
    %cst_8 = arith.constant dense<0.000000e+00> : vector<8x128xf32>
    %29 = tpu.matmul %27, %28, %cst_8 {dimension_numbers = #tpu.dot_dimension_numbers<[1], [0], [0], [1], [0, 0, 1, 1], [], []>} : vector<8x128xbf16>, vector<128x128xbf16>, vector<8x128xf32> -> vector<8x128xf32>
    %30 = arith.addf %29, %26 : vector<8x128xf32>
    %cst_9 = arith.constant 0.000000e+00 : f32
    %31 = vector.broadcast %cst_9 : f32 to vector<8x128xf32>
    %32 = arith.maximumf %30, %31 : vector<8x128xf32>
    %33 = arith.truncf %32 : vector<8x128xf32> to vector<8x128xbf16>
    %c0_10 = arith.constant 0 : index
    %c0_11 = arith.constant 0 : index
    %34 = vector.load %arg5[%c0_10, %c0_11] : memref<128x8xbf16, #tpu.memory_space<vmem>>, vector<128x8xbf16>
    %cst_12 = arith.constant dense<0.000000e+00> : vector<8x8xf32>
    %35 = tpu.matmul %33, %34, %cst_12 {dimension_numbers = #tpu.dot_dimension_numbers<[1], [0], [0], [1], [0, 0, 1, 1], [], []>} : vector<8x128xbf16>, vector<128x8xbf16>, vector<8x8xf32> -> vector<8x8xf32>
    %c0_13 = arith.constant 0 : index
    %c0_14 = arith.constant 0 : index
    %36 = vector.load %arg6[%c0_13, %c0_14] : memref<8x8xf32, #tpu.memory_space<vmem>>, vector<8x8xf32>
    tpu.vector_store %arg6[%c0_13, %c0_14], %35 {strides = array<i32>} : memref<8x8xf32, #tpu.memory_space<vmem>>, vector<8x8xf32>,
    return
  }
  func.func @transform_0(%arg0: i32) -> (i32, i32) {
    %c0_i32 = arith.constant 0 : i32
    %c0_i32_0 = arith.constant 0 : i32
    return %arg0, %c0_i32 : i32, i32
  }
  func.func @transform_1(%arg0: i32) -> (i32, i32) {
    %c0_i32 = arith.constant 0 : i32
    %c0_i32_0 = arith.constant 0 : i32
    %c0_i32_1 = arith.constant 0 : i32
    return %c0_i32, %c0_i32_0 : i32, i32
  }
  func.func @transform_2(%arg0: i32) -> (i32, i32) {
    %c0_i32 = arith.constant 0 : i32
    %c0_i32_0 = arith.constant 0 : i32
    %c0_i32_1 = arith.constant 0 : i32
    return %c0_i32, %c0_i32_0 : i32, i32
  }
  func.func @transform_3(%arg0: i32) -> (i32, i32) {
    %c0_i32 = arith.constant 0 : i32
    %c0_i32_0 = arith.constant 0 : i32
    %c0_i32_1 = arith.constant 0 : i32
    return %c0_i32, %c0_i32_0 : i32, i32
  }
  func.func @transform_4(%arg0: i32) -> (i32, i32) {
    %c0_i32 = arith.constant 0 : i32
    %c0_i32_0 = arith.constant 0 : i32
    %c0_i32_1 = arith.constant 0 : i32
    return %c0_i32, %c0_i32_0 : i32, i32
  }
  func.func @transform_5(%arg0: i32) -> (i32, i32) {
    %c0_i32 = arith.constant 0 : i32
    %c0_i32_0 = arith.constant 0 : i32
    return %arg0, %c0_i32 : i32, i32
  }
}

module attributes {stable_mosaic.version = 11 : i64} {
  func.func @kernel(%arg0: i32, %arg1: memref<8x128xbf16, #tpu.memory_space<vmem>>, %arg2: memref<1x128xf32, #tpu.memory_space<vmem>>, %arg3: memref<32x128xbf16, #tpu.memory_space<vmem>>, %arg4: memref<128x128xbf16, #tpu.memory_space<vmem>>, %arg5: memref<128x8xbf16, #tpu.memory_space<vmem>>, %arg6: memref<8x8xf32, #tpu.memory_space<vmem>>) attributes {dimension_semantics = [#tpu.dimension_semantics<parallel>], iteration_bounds = array<i64: 2>, scalar_prefetch = 0 : i64, scratch_operands = 0 : i64, tpu.core_type = #tpu.core_type<tc>, window_params = [{transform_indices = @transform_0, window_bounds = array<i64: 8, 128>}, {pipeline_mode = #tpu.pipeline_mode<synchronous>, transform_indices = @transform_1, window_bounds = array<i64: 1, 128>}, {pipeline_mode = #tpu.pipeline_mode<synchronous>, transform_indices = @transform_2, window_bounds = array<i64: 32, 128>}, {pipeline_mode = #tpu.pipeline_mode<synchronous>, transform_indices = @transform_3, window_bounds = array<i64: 128, 128>}, {pipeline_mode = #tpu.pipeline_mode<synchronous>, transform_indices = @transform_4, window_bounds = array<i64: 128, 8>}, {transform_indices = @transform_5, window_bounds = array<i64: 8, 8>}]} {
    %c0 = arith.constant 0 : index
    %c0_0 = arith.constant 0 : index
    %0 = vector.load %arg1[%c0, %c0_0] : memref<8x128xbf16, #tpu.memory_space<vmem>>, vector<8x128xbf16>
    %1 = arith.extf %0 : vector<8x128xbf16> to vector<8x128xf32>
    %c0_1 = arith.constant 0 : index
    %c0_2 = arith.constant 0 : index
    %2 = vector.load %arg2[%c0_1, %c0_2] : memref<1x128xf32, #tpu.memory_space<vmem>>, vector<1x128xf32>
    %3 = vector.extract_strided_slice %1 {offsets = [0, 0], sizes = [8, 32], strides = [1, 1]} : vector<8x128xf32> to vector<8x32xf32>
    %4 = vector.extract_strided_slice %2 {offsets = [0, 0], sizes = [1, 32], strides = [1, 1]} : vector<1x128xf32> to vector<1x32xf32>
    %5 = vector.broadcast %4 : vector<1x32xf32> to vector<8x32xf32>
    %6 = arith.mulf %3, %5 : vector<8x32xf32>
    %7 = vector.extract_strided_slice %1 {offsets = [0, 32], sizes = [8, 32], strides = [1, 1]} : vector<8x128xf32> to vector<8x32xf32>
    %8 = vector.extract_strided_slice %2 {offsets = [0, 32], sizes = [1, 32], strides = [1, 1]} : vector<1x128xf32> to vector<1x32xf32>
    %9 = vector.broadcast %8 : vector<1x32xf32> to vector<8x32xf32>
    %10 = arith.mulf %7, %9 : vector<8x32xf32>
    %11 = arith.addf %6, %10 : vector<8x32xf32>
    %12 = vector.extract_strided_slice %1 {offsets = [0, 64], sizes = [8, 32], strides = [1, 1]} : vector<8x128xf32> to vector<8x32xf32>
    %13 = vector.extract_strided_slice %2 {offsets = [0, 64], sizes = [1, 32], strides = [1, 1]} : vector<1x128xf32> to vector<1x32xf32>
    %14 = vector.broadcast %13 : vector<1x32xf32> to vector<8x32xf32>
    %15 = arith.mulf %12, %14 : vector<8x32xf32>
    %16 = arith.addf %11, %15 : vector<8x32xf32>
    %17 = vector.extract_strided_slice %1 {offsets = [0, 96], sizes = [8, 32], strides = [1, 1]} : vector<8x128xf32> to vector<8x32xf32>
    %18 = vector.extract_strided_slice %2 {offsets = [0, 96], sizes = [1, 32], strides = [1, 1]} : vector<1x128xf32> to vector<1x32xf32>
    %19 = vector.broadcast %18 : vector<1x32xf32> to vector<8x32xf32>
    %20 = arith.mulf %17, %19 : vector<8x32xf32>
    %21 = arith.addf %16, %20 : vector<8x32xf32>
    %22 = arith.truncf %21 : vector<8x32xf32> to vector<8x32xbf16>
    %c0_3 = arith.constant 0 : index
    %c0_4 = arith.constant 0 : index
    %23 = vector.load %arg3[%c0_3, %c0_4] : memref<32x128xbf16, #tpu.memory_space<vmem>>, vector<32x128xbf16>
    %cst = arith.constant dense<0.000000e+00> : vector<8x128xf32>
    %24 = tpu.matmul %22, %23, %cst {dimension_numbers = #tpu.dot_dimension_numbers<[1], [0], [0], [1], [0, 0, 1, 1], [], []>} : vector<8x32xbf16>, vector<32x128xbf16>, vector<8x128xf32> -> vector<8x128xf32>
    %cst_5 = arith.constant 0.000000e+00 : f32
    %25 = vector.broadcast %cst_5 : f32 to vector<8x128xf32>
    %26 = arith.maximumf %24, %25 : vector<8x128xf32>
    %27 = arith.truncf %26 : vector<8x128xf32> to vector<8x128xbf16>
    %c0_6 = arith.constant 0 : index
    %c0_7 = arith.constant 0 : index
    %28 = vector.load %arg4[%c0_6, %c0_7] : memref<128x128xbf16, #tpu.memory_space<vmem>>, vector<128x128xbf16>
    %cst_8 = arith.constant dense<0.000000e+00> : vector<8x128xf32>
    %29 = tpu.matmul %27, %28, %cst_8 {dimension_numbers = #tpu.dot_dimension_numbers<[1], [0], [0], [1], [0, 0, 1, 1], [], []>} : vector<8x128xbf16>, vector<128x128xbf16>, vector<8x128xf32> -> vector<8x128xf32>
    %30 = arith.addf %29, %26 : vector<8x128xf32>
    %cst_9 = arith.constant 0.000000e+00 : f32
    %31 = vector.broadcast %cst_9 : f32 to vector<8x128xf32>
    %32 = arith.maximumf %30, %31 : vector<8x128xf32>
    %33 = arith.truncf %32 : vector<8x128xf32> to vector<8x128xbf16>
    %c0_10 = arith.constant 0 : index
    %c0_11 = arith.constant 0 : index
    %34 = vector.load %arg5[%c0_10, %c0_11] : memref<128x8xbf16, #tpu.memory_space<vmem>>, vector<128x8xbf16>
    %cst_12 = arith.constant dense<0.000000e+00> : vector<8x8xf32>
    %35 = tpu.matmul %33, %34, %cst_12 {dimension_numbers = #tpu.dot_dimension_numbers<[1], [0], [0], [1], [0, 0, 1, 1], [], []>} : vector<8x128xbf16>, vector<128x8xbf16>, vector<8x8xf32> -> vector<8x8xf32>
    %c0_13 = arith.constant 0 : index
    %c0_14 = arith.constant 0 : index
    %36 = vector.load %arg6[%c0_13, %c0_14] : memref<8x8xf32, #tpu.memory_space<vmem>>, vector<8x8xf32>
    tpu.vector_store %arg6[%c0_13, %c0_14], %35 {strides = array<i32>} : memref<8x8xf32, #tpu.memory_space<vmem>>, vector<8x8xf32>,
    return
  }
  func.func @transform_0(%arg0: i32) -> (i32, i32) {
    %c0_i32 = arith.constant 0 : i32
    %c0_i32_0 = arith.constant 0 : i32
    return %arg0, %c0_i32 : i32, i32
  }
  func.func @transform_1(%arg0: i32) -> (i32, i32) {
    %c0_i32 = arith.constant 0 : i32
    %c0_i32_0 = arith.constant 0 : i32
    %c0_i32_1 = arith.constant 0 : i32
    return %c0_i32, %c0_i32_0 : i32, i32
  }
  func.func @transform_2(%arg0: i32) -> (i32, i32) {
    %c0_i32 = arith.constant 0 : i32
    %c0_i32_0 = arith.constant 0 : i32
    %c0_i32_1 = arith.constant 0 : i32
    return %c0_i32, %c0_i32_0 : i32, i32
  }
  func.func @transform_3(%arg0: i32) -> (i32, i32) {
    %c0_i32 = arith.constant 0 : i32
    %c0_i32_0 = arith.constant 0 : i32
    %c0_i32_1 = arith.constant 0 : i32
    return %c0_i32, %c0_i32_0 : i32, i32
  }
  func.func @transform_4(%arg0: i32) -> (i32, i32) {
    %c0_i32 = arith.constant 0 : i32
    %c0_i32_0 = arith.constant 0 : i32
    %c0_i32_1 = arith.constant 0 : i32
    return %c0_i32, %c0_i32_0 : i32, i32
  }
  func.func @transform_5(%arg0: i32) -> (i32, i32) {
    %c0_i32 = arith.constant 0 : i32
    %c0_i32_0 = arith.constant 0 : i32
    return %arg0, %c0_i32 : i32, i32
  }
}

</mosaic_0001>

<llo_original>
// kernel: gfk_forward.1
$region0: #{gfk_forward.1}
  #allocation0 [shape = 'u32[]', space=smem, size = 0x4, offset = 0x4, fixed_abs, tag = 'smem constant byte address 0x4 - core index']
  #allocation1 [shape = 'u32[72,128]{1,0:T(1,128)}', space=vmem, size = 0x9000, scoped, tag = 'internal scratch']
  %s0 = inlined_call_operand.vmem [shape: bf16[16,128], index: 0, kind: input, shape index: {}]
  %s1 = inlined_call_operand.vmem [shape: f32[1,128], index: 1, kind: input, shape index: {}]
  %s2 = inlined_call_operand.vmem [shape: bf16[32,128], index: 2, kind: input, shape index: {}]
  %s3 = inlined_call_operand.vmem [shape: bf16[128,128], index: 3, kind: input, shape index: {}]
  %s4 = inlined_call_operand.vmem [shape: bf16[128,8], index: 4, kind: input, shape index: {}]
  %s5 = inlined_call_operand.vmem [shape: f32[16,8], index: 5, kind: output, shape index: {}]
  %s6 = sld [smem:[#allocation0]]
  $region53: #{gfk_forward.1} parent=0
    _
  %s8 = ssub.s32 1, %s6
  %s9 = scalar_select 0, %s8, %s6
  loop: start=0, step=1, limit=4
  $region2: #{gfk_forward.1} parent=0 // loop_pre_header
    _
  $region3: #{gfk_forward.1} parent=0 // loop_header
    %s11 = sphi 0, %s15
    %p12 = scmp.ge.s32.totalorder %s11, 4
    %s21 = sphi 0, %s23
    %s24 = sphi 0, %s21
    %s25 = sphi 0, %s24
    %s41 = sphi 0, %s25
    %s45 = sphi 0, %s45
    %s47 = sphi 0, %s45
    %s48 = sphi 0, %s47
    %s62 = sphi 0, %s48
    %s66 = sphi 0, %s66
    %s68 = sphi 0, %s66
    %s69 = sphi 0, %s68
    %s83 = sphi 0, %s69
    %s87 = sphi 0, %s87
    %s89 = sphi 0, %s87
    %s90 = sphi 0, %s89
    %s104 = sphi 0, %s90
    %s108 = sphi 0, %s108
    %s110 = sphi 0, %s108
    %s111 = sphi 0, %s110
    %s125 = sphi 0, %s111
    %s131 = sphi 0, %s133
    %s134 = sphi 0, %s131
    %s135 = sphi 0, %s134
    %s151 = sphi 0, %s135
  $region4: #{gfk_forward.1} parent=0 // loop_header_branch
    %14 = sbr.rel (%p12) target = $region8
  $region5: #{gfk_forward.1} parent=0 // loop_body
    %s16 = ssub.s32 %s11, 1
    %s17 = ssub.s32 %s11, 2
    %s18 = sadd.s32 %s11, 1
    %s19 = ssub.s32 %s11, %s18
    %p20 = scmp.eq.s32.totalorder %s19, 0
    %s22 = sadd.s32 %s21, 1
    %s23 = scalar_select %p20, %s21, %s22
    %p26 = pneg %p20
    %p27 = scmp.eq.s32.totalorder %s11, 1
    %p28 = por %p26, %p27
    %p29 = scmp.ne.s32.totalorder %s21, %s24
    %p30 = scmp.eq.s32.totalorder %s11, 0
    %p31 = por %p29, %p30
    %p32 = scmp.ne.s32.totalorder %s21, %s24
    %p33 = scmp.eq.s32.totalorder %s16, 1
    %p34 = por %p32, %p33
    %p35 = scmp.ne.s32.totalorder %s24, %s25
    %p36 = scmp.eq.s32.totalorder %s16, 0
    %p37 = por %p35, %p36
    %p38 = scmp.ne.s32.totalorder %s24, %s25
    %p39 = scmp.eq.s32.totalorder %s17, 1
    %p40 = por %p38, %p39
    %p42 = scmp.ne.s32.totalorder %s25, %s41
    %p43 = scmp.eq.s32.totalorder %s17, 0
    %p44 = por %p42, %p43
    %s46 = sadd.s32 %s45, 1
    %p49 = scmp.eq.s32.totalorder %s11, 1
    %p50 = scmp.ne.s32.totalorder %s45, %s47
    %p51 = scmp.eq.s32.totalorder %s11, 0
    %p52 = por %p50, %p51
    %p53 = scmp.ne.s32.totalorder %s45, %s47
    %p54 = scmp.eq.s32.totalorder %s16, 1
    %p55 = por %p53, %p54
    %p56 = scmp.ne.s32.totalorder %s47, %s48
    %p57 = scmp.eq.s32.totalorder %s16, 0
    %p58 = por %p56, %p57
    %p59 = scmp.ne.s32.totalorder %s47, %s48
    %p60 = scmp.eq.s32.totalorder %s17, 1
    %p61 = por %p59, %p60
    %p63 = scmp.ne.s32.totalorder %s48, %s62
    %p64 = scmp.eq.s32.totalorder %s17, 0
    %p65 = por %p63, %p64
    %s67 = sadd.s32 %s66, 1
    %p70 = scmp.eq.s32.totalorder %s11, 1
    %p71 = scmp.ne.s32.totalorder %s66, %s68
    %p72 = scmp.eq.s32.totalorder %s11, 0
    %p73 = por %p71, %p72
    %p74 = scmp.ne.s32.totalorder %s66, %s68
    %p75 = scmp.eq.s32.totalorder %s16, 1
    %p76 = por %p74, %p75
    %p77 = scmp.ne.s32.totalorder %s68, %s69
    %p78 = scmp.eq.s32.totalorder %s16, 0
    %p79 = por %p77, %p78
    %p80 = scmp.ne.s32.totalorder %s68, %s69
    %p81 = scmp.eq.s32.totalorder %s17, 1
    %p82 = por %p80, %p81
    %p84 = scmp.ne.s32.totalorder %s69, %s83
    %p85 = scmp.eq.s32.totalorder %s17, 0
    %p86 = por %p84, %p85
    %s88 = sadd.s32 %s87, 1
    %p91 = scmp.eq.s32.totalorder %s11, 1
    %p92 = scmp.ne.s32.totalorder %s87, %s89
    %p93 = scmp.eq.s32.totalorder %s11, 0
    %p94 = por %p92, %p93
    %p95 = scmp.ne.s32.totalorder %s87, %s89
    %p96 = scmp.eq.s32.totalorder %s16, 1
    %p97 = por %p95, %p96
    %p98 = scmp.ne.s32.totalorder %s89, %s90
    %p99 = scmp.eq.s32.totalorder %s16, 0
    %p100 = por %p98, %p99
    %p101 = scmp.ne.s32.totalorder %s89, %s90
    %p102 = scmp.eq.s32.totalorder %s17, 1
    %p103 = por %p101, %p102
    %p105 = scmp.ne.s32.totalorder %s90, %s104
    %p106 = scmp.eq.s32.totalorder %s17, 0
    %p107 = por %p105, %p106
    %s109 = sadd.s32 %s108, 1
    %p112 = scmp.eq.s32.totalorder %s11, 1
    %p113 = scmp.ne.s32.totalorder %s108, %s110
    %p114 = scmp.eq.s32.totalorder %s11, 0
    %p115 = por %p113, %p114
    %p116 = scmp.ne.s32.totalorder %s108, %s110
    %p117 = scmp.eq.s32.totalorder %s16, 1
    %p118 = por %p116, %p117
    %p119 = scmp.ne.s32.totalorder %s110, %s111
    %p120 = scmp.eq.s32.totalorder %s16, 0
    %p121 = por %p119, %p120
    %p122 = scmp.ne.s32.totalorder %s110, %s111
    %p123 = scmp.eq.s32.totalorder %s17, 1
    %p124 = por %p122, %p123
    %p126 = scmp.ne.s32.totalorder %s111, %s125
    %p127 = scmp.eq.s32.totalorder %s17, 0
    %p128 = por %p126, %p127
    %s129 = ssub.s32 %s11, %s18
    %p130 = scmp.eq.s32.totalorder %s129, 0
    %s132 = sadd.s32 %s131, 1
    %s133 = scalar_select %p130, %s131, %s132
    %p136 = pneg %p130
    %p137 = scmp.eq.s32.totalorder %s11, 1
    %p138 = por %p136, %p137
    %p139 = scmp.ne.s32.totalorder %s131, %s134
    %p140 = scmp.eq.s32.totalorder %s11, 0
    %p141 = por %p139, %p140
    %p142 = scmp.ne.s32.totalorder %s131, %s134
    %p143 = scmp.eq.s32.totalorder %s16, 1
    %p144 = por %p142, %p143
    %p145 = scmp.ne.s32.totalorder %s134, %s135
    %p146 = scmp.eq.s32.totalorder %s16, 0
    %p147 = por %p145, %p146
    %p148 = scmp.ne.s32.totalorder %s134, %s135
    %p149 = scmp.eq.s32.totalorder %s17, 1
    %p150 = por %p148, %p149
    %p152 = scmp.ne.s32.totalorder %s135, %s151
    %p153 = scmp.eq.s32.totalorder %s17, 0
    %p154 = por %p152, %p153
    %p155 = scmp.le.s32.totalorder 1, %s11
    %p156 = scmp.lt.s32.totalorder %s11, 3
    %p157 = pnand %p155, %p156
    %p158 = pneg %p157
    // Predicated region
    $region9: #{gfk_forward.1} parent=5 // pred_check
      _
    $region10: #{gfk_forward.1} parent=5 // pred_check_branch
      %160 = sbr.rel (%p157) target = $region12
    $region11: #{gfk_forward.1} parent=5 // pred_region
      %s161 = ssub.s32 %s11, 1
      // Predicated region
      $region13: #{gfk_forward.1} parent=11 // pred_check
        %p162 = pneg %p58
      $region14: #{gfk_forward.1} parent=11 // pred_check_branch
        %164 = sbr.rel (%p162) target = $region16
      $region15: #{gfk_forward.1} parent=11 // pred_region
        _
      $region16: #{gfk_forward.1} parent=11 // pred_fallthru
        _
      // Predicated region
      $region17: #{gfk_forward.1} parent=11 // pred_check
        %p165 = pneg %p79
      $region18: #{gfk_forward.1} parent=11 // pred_check_branch
        %167 = sbr.rel (%p165) target = $region20
      $region19: #{gfk_forward.1} parent=11 // pred_region
        _
      $region20: #{gfk_forward.1} parent=11 // pred_fallthru
        _
      // Predicated region
      $region21: #{gfk_forward.1} parent=11 // pred_check
        %p168 = pneg %p100
      $region22: #{gfk_forward.1} parent=11 // pred_check_branch
        %170 = sbr.rel (%p168) target = $region24
      $region23: #{gfk_forward.1} parent=11 // pred_region
        _
      $region24: #{gfk_forward.1} parent=11 // pred_fallthru
        _
      // Predicated region
      $region25: #{gfk_forward.1} parent=11 // pred_check
        %p171 = pneg %p121
      $region26: #{gfk_forward.1} parent=11 // pred_check_branch
        %173 = sbr.rel (%p171) target = $region28
      $region27: #{gfk_forward.1} parent=11 // pred_region
        _
      $region28: #{gfk_forward.1} parent=11 // pred_fallthru
        _
    $region12: #{gfk_forward.1} parent=5 // pred_fallthru
      _
    %p174 = scmp.lt.s32.totalorder %s11, 2
    // Predicated region
    $region29: #{gfk_forward.1} parent=5 // pred_check
      %p175 = pneg %p174
    $region30: #{gfk_forward.1} parent=5 // pred_check_branch
      %177 = sbr.rel (%p175) target = $region32
    $region31: #{gfk_forward.1} parent=5 // pred_region
      // Predicated region
      $region33: #{gfk_forward.1} parent=31 // pred_check
        %p178 = pneg %p31
      $region34: #{gfk_forward.1} parent=31 // pred_check_branch
        %180 = sbr.rel (%p178) target = $region36
      $region35: #{gfk_forward.1} parent=31 // pred_region
        %p181 = scmp.lt.s32.totalorder %s11, 1
        %s182 = scalar_select %p181, %s11, 1
        %s183 = smul.addr %s182, 4
        %s184 = scalar_lea.vmem %s0, %s183
      $region36: #{gfk_forward.1} parent=31 // pred_fallthru
        _
    $region32: #{gfk_forward.1} parent=5 // pred_fallthru
      _
    %p185 = scmp.le.s32.totalorder 1, %s11
    %p186 = scmp.lt.s32.totalorder %s11, 3
    %p187 = pnand %p185, %p186
    %p188 = pneg %p187
    // Predicated region
    $region37: #{gfk_forward.1} parent=5 // pred_check
      _
    $region38: #{gfk_forward.1} parent=5 // pred_check_branch
      %190 = sbr.rel (%p187) target = $region40
    $region39: #{gfk_forward.1} parent=5 // pred_region
      %s191 = ssub.s32 %s11, 1
      %p192 = scmp.lt.s32.totalorder %s16, 1
      %s193 = scalar_select %p192, %s16, 1
      %s194 = smul.addr %s193, 4
      %s195 = scalar_lea.vmem %s0, %s194
      %p196 = pneg %p37
      %p197 = pneg %p34
      %p198 = pneg %p58
      %p199 = pneg %p55
      %p200 = pneg %p79
      %p201 = pneg %p76
      %p202 = pneg %p100
      %p203 = pneg %p97
      %p204 = pneg %p121
      %p205 = pneg %p118
      %p206 = pneg %p147
      %p207 = pneg %p144
      %p208 = scmp.lt.s32.totalorder %s16, 1
      %s209 = scalar_select %p208, %s16, 1
      %s210 = smul.addr %s209, 8
      %s211 = scalar_lea.vmem %s5, %s210
      %p212 = scmp.lt.s32.totalorder %s16, 1
      %s213 = scalar_select %p212, %s16, 1
      %s214 = smul.addr %s213, 4
      %s215 = scalar_lea.vmem %s0, %s214
      %p216 = scmp.lt.s32.totalorder %s16, 1
      %s217 = scalar_select %p216, %s16, 1
      %s218 = smul.addr %s217, 8
      %s219 = scalar_lea.vmem %s5, %s218
      %v221 = vld [vmem:[%s215] sm:$0xf]
      %v222 = vunpack.c.l.bf16 %v221
      %v223 = vld [vmem:[%s1] sm:$0x1]
      %v225 = vperm.slane %v223, 0
      %v227 = vmul.f32 %v222, %v225
      %229 = vrot.lane.b32.xlu0 %v227, 96
      %v230 = vpop.permute.xlu0 %229
      %v232 = vadd.f32 %v227, %v230
      %233 = vrot.lane.b32.xlu0 %v227, 64
      %v234 = vpop.permute.xlu0 %233
      %v236 = vadd.f32 %v232, %v234
      %237 = vrot.lane.b32.xlu0 %v227, 32
      %v238 = vpop.permute.xlu0 %237
      %v240 = vadd.f32 %v236, %v238
      %v241 = vpack.c.bf16 %v240, %v240
      %v242 = vld [vmem:[%s2] sm:$0xf]
      %v243 = vld [vmem:[%s2 + $0x4] sm:$0xf]
      %v244 = vld [vmem:[%s2 + $0x8] sm:$0xf]
      %v245 = vld [vmem:[%s2 + $0xc] sm:$0xf]
      %v250 = vunpack.c.l.b16 %v242
      %v251 = vunpack.c.l.b16 %v243
      %v252 = vunpack.c.l.b16 %v244
      %v253 = vunpack.c.l.b16 %v245
      %v254 = vpack.c.b16 %v251, %v250
      %v255 = vpack.c.b16 %v253, %v252
      %vm258 = vcmask 261120
      %v260 = vsel %vm258, %v241, 0
      %262 = vmatpush.bf16.msra.mxu0 0
      %263 = vmatpush.bf16.msra.mxu0 0
      %264 = vmatpush.bf16.msra.mxu0 0
      %265 = vmatpush.bf16.msra.mxu0 0
      %266 = vmatpush.bf16.msra.mxu0 0
      %267 = vmatpush.bf16.msra.mxu0 0
      %268 = vmatpush.bf16.msra.mxu0 %v255
      %269 = vmatpush.bf16.msra.mxu0 %v254
      %270 = vmatmul.bf16.gmra.mxu0 %v260
      %v271 = vpop.f32.mrf.mxu0
      %v272 = vadd.f32 0.0, %v271
      %v273 = vpop.f32.mrf.mxu0
      %274 = vdwg.mxu0
      %v275 = vmax.f32 %v272, 0.0
      %v276 = vpack.c.bf16 %v275, %v275
      %v277 = vld [vmem:[%s3] sm:$0xf]
      %v278 = vld [vmem:[%s3 + $0x4] sm:$0xf]
      %v279 = vld [vmem:[%s3 + $0x8] sm:$0xf]
      %v280 = vld [vmem:[%s3 + $0xc] sm:$0xf]
      %v281 = vld [vmem:[%s3 + $0x10] sm:$0xf]
      %v282 = vld [vmem:[%s3 + $0x14] sm:$0xf]
      %v283 = vld [vmem:[%s3 + $0x18] sm:$0xf]
      %v284 = vld [vmem:[%s3 + $0x1c] sm:$0xf]
      %v285 = vld [vmem:[%s3 + $0x20] sm:$0xf]
      %v286 = vld [vmem:[%s3 + $0x24] sm:$0xf]
      %v287 = vld [vmem:[%s3 + $0x28] sm:$0xf]
      %v288 = vld [vmem:[%s3 + $0x2c] sm:$0xf]
      %v289 = vld [vmem:[%s3 + $0x30] sm:$0xf]
      %v290 = vld [vmem:[%s3 + $0x34] sm:$0xf]
      %v291 = vld [vmem:[%s3 + $0x38] sm:$0xf]
      %v292 = vld [vmem:[%s3 + $0x3c] sm:$0xf]
      %v309 = vunpack.c.l.b16 %v277
      %v310 = vunpack.c.l.b16 %v278
      %v311 = vunpack.c.l.b16 %v279
      %v312 = vunpack.c.l.b16 %v280
      %v313 = vunpack.c.l.b16 %v281
      %v314 = vunpack.c.l.b16 %v282
      %v315 = vunpack.c.l.b16 %v283
      %v316 = vunpack.c.l.b16 %v284
      %v317 = vunpack.c.l.b16 %v285
      %v318 = vunpack.c.l.b16 %v286
      %v319 = vunpack.c.l.b16 %v287
      %v320 = vunpack.c.l.b16 %v288
      %v321 = vunpack.c.l.b16 %v289
      %v322 = vunpack.c.l.b16 %v290
      %v323 = vunpack.c.l.b16 %v291
      %v324 = vunpack.c.l.b16 %v292
      %v325 = vpack.c.b16 %v310, %v309
      %v326 = vpack.c.b16 %v312, %v311
      %v327 = vpack.c.b16 %v314, %v313
      %v328 = vpack.c.b16 %v316, %v315
      %v329 = vpack.c.b16 %v318, %v317
      %v330 = vpack.c.b16 %v320, %v319
      %v331 = vpack.c.b16 %v322, %v321
      %v332 = vpack.c.b16 %v324, %v323
      %341 = vmatpush.bf16.msra.mxu0 %v332
      %342 = vmatpush.bf16.msra.mxu0 %v331
      %343 = vmatpush.bf16.msra.mxu0 %v330
      %344 = vmatpush.bf16.msra.mxu0 %v329
      %345 = vmatpush.bf16.msra.mxu0 %v328
      %346 = vmatpush.bf16.msra.mxu0 %v327
      %347 = vmatpush.bf16.msra.mxu0 %v326
      %348 = vmatpush.bf16.msra.mxu0 %v325
      %349 = vmatmul.bf16.gmra.mxu0 %v276
      %v350 = vpop.f32.mrf.mxu0
      %v351 = vadd.f32 %v275, %v350
      %v352 = vpop.f32.mrf.mxu0
      %353 = vdwg.mxu0
      %v354 = vmax.f32 %v351, 0.0
      %v355 = vpack.c.bf16 %v354, %v354
      %v356 = vld [vmem:[%s4] sm:$0xf]
      %v357 = vld [vmem:[%s4 + $0x4] sm:$0xf]
      %v358 = vld [vmem:[%s4 + $0x8] sm:$0xf]
      %v359 = vld [vmem:[%s4 + $0xc] sm:$0xf]
      %v360 = vld [vmem:[%s4 + $0x10] sm:$0xf]
      %v361 = vld [vmem:[%s4 + $0x14] sm:$0xf]
      %v362 = vld [vmem:[%s4 + $0x18] sm:$0xf]
      %v363 = vld [vmem:[%s4 + $0x1c] sm:$0xf]
      %v364 = vld [vmem:[%s4 + $0x20] sm:$0xf]
      %v365 = vld [vmem:[%s4 + $0x24] sm:$0xf]
      %v366 = vld [vmem:[%s4 + $0x28] sm:$0xf]
      %v367 = vld [vmem:[%s4 + $0x2c] sm:$0xf]
      %v368 = vld [vmem:[%s4 + $0x30] sm:$0xf]
      %v369 = vld [vmem:[%s4 + $0x34] sm:$0xf]
      %v370 = vld [vmem:[%s4 + $0x38] sm:$0xf]
      %v371 = vld [vmem:[%s4 + $0x3c] sm:$0xf]
      %v388 = vunpack.c.l.b16 %v356
      %v389 = vunpack.c.l.b16 %v357
      %v390 = vunpack.c.l.b16 %v358
      %v391 = vunpack.c.l.b16 %v359
      %v392 = vunpack.c.l.b16 %v360
      %v393 = vunpack.c.l.b16 %v361
      %v394 = vunpack.c.l.b16 %v362
      %v395 = vunpack.c.l.b16 %v363
      %v396 = vunpack.c.l.b16 %v364
      %v397 = vunpack.c.l.b16 %v365
      %v398 = vunpack.c.l.b16 %v366
      %v399 = vunpack.c.l.b16 %v367
      %v400 = vunpack.c.l.b16 %v368
      %v401 = vunpack.c.l.b16 %v369
      %v402 = vunpack.c.l.b16 %v370
      %v403 = vunpack.c.l.b16 %v371
      %v404 = vpack.c.b16 %v389, %v388
      %v405 = vpack.c.b16 %v391, %v390
      %v406 = vpack.c.b16 %v393, %v392
      %v407 = vpack.c.b16 %v395, %v394
      %v408 = vpack.c.b16 %v397, %v396
      %v409 = vpack.c.b16 %v399, %v398
      %v410 = vpack.c.b16 %v401, %v400
      %v411 = vpack.c.b16 %v403, %v402
      %420 = vmatpush.bf16.msra.mxu0 %v411
      %421 = vmatpush.bf16.msra.mxu0 %v410
      %422 = vmatpush.bf16.msra.mxu0 %v409
      %423 = vmatpush.bf16.msra.mxu0 %v408
      %424 = vmatpush.bf16.msra.mxu0 %v407
      %425 = vmatpush.bf16.msra.mxu0 %v406
      %426 = vmatpush.bf16.msra.mxu0 %v405
      %427 = vmatpush.bf16.msra.mxu0 %v404
      %428 = vmatmul.bf16.gmra.mxu0 %v355
      %v429 = vpop.f32.mrf.mxu0
      %v430 = vadd.f32 0.0, %v429
      %v431 = vpop.f32.mrf.mxu0
      %432 = vdwg.mxu0
      %vm433 = vcmask 64512
      %434 = vst.msk [vmem:[%s219] sm:$0xff] %vm433, %v430
      %p435 = scmp.lt.s32.totalorder %s16, 1
      %s436 = scalar_select %p435, %s16, 1
      %s437 = smul.addr %s436, 8
      %s438 = scalar_lea.vmem %s5, %s437
      // Predicated region
      $region41: #{gfk_forward.1} parent=39 // pred_check
        %p439 = pneg %p144
      $region42: #{gfk_forward.1} parent=39 // pred_check_branch
        %441 = sbr.rel (%p439) target = $region44
      $region43: #{gfk_forward.1} parent=39 // pred_region
        _
      $region44: #{gfk_forward.1} parent=39 // pred_fallthru
        _
    $region40: #{gfk_forward.1} parent=5 // pred_fallthru
      _
    %p442 = scmp.le.s32.totalorder 2, %s11
    // Predicated region
    $region45: #{gfk_forward.1} parent=5 // pred_check
      %p443 = pneg %p442
    $region46: #{gfk_forward.1} parent=5 // pred_check_branch
      %445 = sbr.rel (%p443) target = $region48
    $region47: #{gfk_forward.1} parent=5 // pred_region
      %s446 = ssub.s32 %s11, 2
      // Predicated region
      $region49: #{gfk_forward.1} parent=47 // pred_check
        %p447 = pneg %p150
      $region50: #{gfk_forward.1} parent=47 // pred_check_branch
        %449 = sbr.rel (%p447) target = $region52
      $region51: #{gfk_forward.1} parent=47 // pred_region
        %p450 = scmp.lt.s32.totalorder %s17, 1
        %s451 = scalar_select %p450, %s17, 1
        %s452 = smul.addr %s451, 8
        %s453 = scalar_lea.vmem %s5, %s452
      $region52: #{gfk_forward.1} parent=47 // pred_fallthru
        _
    $region48: #{gfk_forward.1} parent=5 // pred_fallthru
      _
  $region6: #{gfk_forward.1} parent=0 // loop_footer
    %s15 = sadd.s32 1, %s11
  $region7: #{gfk_forward.1} parent=0 // loop_footer_branch
    %10 = sbr.rel target = $region3
  $region8: #{gfk_forward.1} parent=0 // loop_exit
    _

// kernel: gfk_forward.1
$region0: #{gfk_forward.1}
  #allocation0 [shape = 'u32[]', space=smem, size = 0x4, offset = 0x4, fixed_abs, tag = 'smem constant byte address 0x4 - core index']
  #allocation1 [shape = 'u32[72,128]{1,0:T(1,128)}', space=vmem, size = 0x9000, scoped, tag = 'internal scratch']
  %s0 = inlined_call_operand.vmem [shape: bf16[16,128], index: 0, kind: input, shape index: {}]
  %s1 = inlined_call_operand.vmem [shape: f32[1,128], index: 1, kind: input, shape index: {}]
  %s2 = inlined_call_operand.vmem [shape: bf16[32,128], index: 2, kind: input, shape index: {}]
  %s3 = inlined_call_operand.vmem [shape: bf16[128,128], index: 3, kind: input, shape index: {}]
  %s4 = inlined_call_operand.vmem [shape: bf16[128,8], index: 4, kind: input, shape index: {}]
  %s5 = inlined_call_operand.vmem [shape: f32[16,8], index: 5, kind: output, shape index: {}]
  %s6 = sld [smem:[#allocation0]]
  $region53: #{gfk_forward.1} parent=0
    _
  %s8 = ssub.s32 1, %s6
  %s9 = scalar_select 0, %s8, %s6
  loop: start=0, step=1, limit=4
  $region2: #{gfk_forward.1} parent=0 // loop_pre_header
    _
  $region3: #{gfk_forward.1} parent=0 // loop_header
    %s11 = sphi 0, %s15
    %p12 = scmp.ge.s32.totalorder %s11, 4
    %s21 = sphi 0, %s23
    %s24 = sphi 0, %s21
    %s25 = sphi 0, %s24
    %s41 = sphi 0, %s25
    %s45 = sphi 0, %s45
    %s47 = sphi 0, %s45
    %s48 = sphi 0, %s47
    %s62 = sphi 0, %s48
    %s66 = sphi 0, %s66
    %s68 = sphi 0, %s66
    %s69 = sphi 0, %s68
    %s83 = sphi 0, %s69
    %s87 = sphi 0, %s87
    %s89 = sphi 0, %s87
    %s90 = sphi 0, %s89
    %s104 = sphi 0, %s90
    %s108 = sphi 0, %s108
    %s110 = sphi 0, %s108
    %s111 = sphi 0, %s110
    %s125 = sphi 0, %s111
    %s131 = sphi 0, %s133
    %s134 = sphi 0, %s131
    %s135 = sphi 0, %s134
    %s151 = sphi 0, %s135
  $region4: #{gfk_forward.1} parent=0 // loop_header_branch
    %14 = sbr.rel (%p12) target = $region8
  $region5: #{gfk_forward.1} parent=0 // loop_body
    %s16 = ssub.s32 %s11, 1
    %s17 = ssub.s32 %s11, 2
    %s18 = sadd.s32 %s11, 1
    %s19 = ssub.s32 %s11, %s18
    %p20 = scmp.eq.s32.totalorder %s19, 0
    %s22 = sadd.s32 %s21, 1
    %s23 = scalar_select %p20, %s21, %s22
    %p26 = pneg %p20
    %p27 = scmp.eq.s32.totalorder %s11, 1
    %p28 = por %p26, %p27
    %p29 = scmp.ne.s32.totalorder %s21, %s24
    %p30 = scmp.eq.s32.totalorder %s11, 0
    %p31 = por %p29, %p30
    %p32 = scmp.ne.s32.totalorder %s21, %s24
    %p33 = scmp.eq.s32.totalorder %s16, 1
    %p34 = por %p32, %p33
    %p35 = scmp.ne.s32.totalorder %s24, %s25
    %p36 = scmp.eq.s32.totalorder %s16, 0
    %p37 = por %p35, %p36
    %p38 = scmp.ne.s32.totalorder %s24, %s25
    %p39 = scmp.eq.s32.totalorder %s17, 1
    %p40 = por %p38, %p39
    %p42 = scmp.ne.s32.totalorder %s25, %s41
    %p43 = scmp.eq.s32.totalorder %s17, 0
    %p44 = por %p42, %p43
    %s46 = sadd.s32 %s45, 1
    %p49 = scmp.eq.s32.totalorder %s11, 1
    %p50 = scmp.ne.s32.totalorder %s45, %s47
    %p51 = scmp.eq.s32.totalorder %s11, 0
    %p52 = por %p50, %p51
    %p53 = scmp.ne.s32.totalorder %s45, %s47
    %p54 = scmp.eq.s32.totalorder %s16, 1
    %p55 = por %p53, %p54
    %p56 = scmp.ne.s32.totalorder %s47, %s48
    %p57 = scmp.eq.s32.totalorder %s16, 0
    %p58 = por %p56, %p57
    %p59 = scmp.ne.s32.totalorder %s47, %s48
    %p60 = scmp.eq.s32.totalorder %s17, 1
    %p61 = por %p59, %p60
    %p63 = scmp.ne.s32.totalorder %s48, %s62
    %p64 = scmp.eq.s32.totalorder %s17, 0
    %p65 = por %p63, %p64
    %s67 = sadd.s32 %s66, 1
    %p70 = scmp.eq.s32.totalorder %s11, 1
    %p71 = scmp.ne.s32.totalorder %s66, %s68
    %p72 = scmp.eq.s32.totalorder %s11, 0
    %p73 = por %p71, %p72
    %p74 = scmp.ne.s32.totalorder %s66, %s68
    %p75 = scmp.eq.s32.totalorder %s16, 1
    %p76 = por %p74, %p75
    %p77 = scmp.ne.s32.totalorder %s68, %s69
    %p78 = scmp.eq.s32.totalorder %s16, 0
    %p79 = por %p77, %p78
    %p80 = scmp.ne.s32.totalorder %s68, %s69
    %p81 = scmp.eq.s32.totalorder %s17, 1
    %p82 = por %p80, %p81
    %p84 = scmp.ne.s32.totalorder %s69, %s83
    %p85 = scmp.eq.s32.totalorder %s17, 0
    %p86 = por %p84, %p85
    %s88 = sadd.s32 %s87, 1
    %p91 = scmp.eq.s32.totalorder %s11, 1
    %p92 = scmp.ne.s32.totalorder %s87, %s89
    %p93 = scmp.eq.s32.totalorder %s11, 0
    %p94 = por %p92, %p93
    %p95 = scmp.ne.s32.totalorder %s87, %s89
    %p96 = scmp.eq.s32.totalorder %s16, 1
    %p97 = por %p95, %p96
    %p98 = scmp.ne.s32.totalorder %s89, %s90
    %p99 = scmp.eq.s32.totalorder %s16, 0
    %p100 = por %p98, %p99
    %p101 = scmp.ne.s32.totalorder %s89, %s90
    %p102 = scmp.eq.s32.totalorder %s17, 1
    %p103 = por %p101, %p102
    %p105 = scmp.ne.s32.totalorder %s90, %s104
    %p106 = scmp.eq.s32.totalorder %s17, 0
    %p107 = por %p105, %p106
    %s109 = sadd.s32 %s108, 1
    %p112 = scmp.eq.s32.totalorder %s11, 1
    %p113 = scmp.ne.s32.totalorder %s108, %s110
    %p114 = scmp.eq.s32.totalorder %s11, 0
    %p115 = por %p113, %p114
    %p116 = scmp.ne.s32.totalorder %s108, %s110
    %p117 = scmp.eq.s32.totalorder %s16, 1
    %p118 = por %p116, %p117
    %p119 = scmp.ne.s32.totalorder %s110, %s111
    %p120 = scmp.eq.s32.totalorder %s16, 0
    %p121 = por %p119, %p120
    %p122 = scmp.ne.s32.totalorder %s110, %s111
    %p123 = scmp.eq.s32.totalorder %s17, 1
    %p124 = por %p122, %p123
    %p126 = scmp.ne.s32.totalorder %s111, %s125
    %p127 = scmp.eq.s32.totalorder %s17, 0
    %p128 = por %p126, %p127
    %s129 = ssub.s32 %s11, %s18
    %p130 = scmp.eq.s32.totalorder %s129, 0
    %s132 = sadd.s32 %s131, 1
    %s133 = scalar_select %p130, %s131, %s132
    %p136 = pneg %p130
    %p137 = scmp.eq.s32.totalorder %s11, 1
    %p138 = por %p136, %p137
    %p139 = scmp.ne.s32.totalorder %s131, %s134
    %p140 = scmp.eq.s32.totalorder %s11, 0
    %p141 = por %p139, %p140
    %p142 = scmp.ne.s32.totalorder %s131, %s134
    %p143 = scmp.eq.s32.totalorder %s16, 1
    %p144 = por %p142, %p143
    %p145 = scmp.ne.s32.totalorder %s134, %s135
    %p146 = scmp.eq.s32.totalorder %s16, 0
    %p147 = por %p145, %p146
    %p148 = scmp.ne.s32.totalorder %s134, %s135
    %p149 = scmp.eq.s32.totalorder %s17, 1
    %p150 = por %p148, %p149
    %p152 = scmp.ne.s32.totalorder %s135, %s151
    %p153 = scmp.eq.s32.totalorder %s17, 0
    %p154 = por %p152, %p153
    %p155 = scmp.le.s32.totalorder 1, %s11
    %p156 = scmp.lt.s32.totalorder %s11, 3
    %p157 = pnand %p155, %p156
    %p158 = pneg %p157
    // Predicated region
    $region9: #{gfk_forward.1} parent=5 // pred_check
      _
    $region10: #{gfk_forward.1} parent=5 // pred_check_branch
      %160 = sbr.rel (%p157) target = $region12
    $region11: #{gfk_forward.1} parent=5 // pred_region
      %s161 = ssub.s32 %s11, 1
      // Predicated region
      $region13: #{gfk_forward.1} parent=11 // pred_check
        %p162 = pneg %p58
      $region14: #{gfk_forward.1} parent=11 // pred_check_branch
        %164 = sbr.rel (%p162) target = $region16
      $region15: #{gfk_forward.1} parent=11 // pred_region
        _
      $region16: #{gfk_forward.1} parent=11 // pred_fallthru
        _
      // Predicated region
      $region17: #{gfk_forward.1} parent=11 // pred_check
        %p165 = pneg %p79
      $region18: #{gfk_forward.1} parent=11 // pred_check_branch
        %167 = sbr.rel (%p165) target = $region20
      $region19: #{gfk_forward.1} parent=11 // pred_region
        _
      $region20: #{gfk_forward.1} parent=11 // pred_fallthru
        _
      // Predicated region
      $region21: #{gfk_forward.1} parent=11 // pred_check
        %p168 = pneg %p100
      $region22: #{gfk_forward.1} parent=11 // pred_check_branch
        %170 = sbr.rel (%p168) target = $region24
      $region23: #{gfk_forward.1} parent=11 // pred_region
        _
      $region24: #{gfk_forward.1} parent=11 // pred_fallthru
        _
      // Predicated region
      $region25: #{gfk_forward.1} parent=11 // pred_check
        %p171 = pneg %p121
      $region26: #{gfk_forward.1} parent=11 // pred_check_branch
        %173 = sbr.rel (%p171) target = $region28
      $region27: #{gfk_forward.1} parent=11 // pred_region
        _
      $region28: #{gfk_forward.1} parent=11 // pred_fallthru
        _
    $region12: #{gfk_forward.1} parent=5 // pred_fallthru
      _
    %p174 = scmp.lt.s32.totalorder %s11, 2
    // Predicated region
    $region29: #{gfk_forward.1} parent=5 // pred_check
      %p175 = pneg %p174
    $region30: #{gfk_forward.1} parent=5 // pred_check_branch
      %177 = sbr.rel (%p175) target = $region32
    $region31: #{gfk_forward.1} parent=5 // pred_region
      // Predicated region
      $region33: #{gfk_forward.1} parent=31 // pred_check
        %p178 = pneg %p31
      $region34: #{gfk_forward.1} parent=31 // pred_check_branch
        %180 = sbr.rel (%p178) target = $region36
      $region35: #{gfk_forward.1} parent=31 // pred_region
        %p181 = scmp.lt.s32.totalorder %s11, 1
        %s182 = scalar_select %p181, %s11, 1
        %s183 = smul.addr %s182, 4
        %s184 = scalar_lea.vmem %s0, %s183
      $region36: #{gfk_forward.1} parent=31 // pred_fallthru
        _
    $region32: #{gfk_forward.1} parent=5 // pred_fallthru
      _
    %p185 = scmp.le.s32.totalorder 1, %s11
    %p186 = scmp.lt.s32.totalorder %s11, 3
    %p187 = pnand %p185, %p186
    %p188 = pneg %p187
    // Predicated region
    $region37: #{gfk_forward.1} parent=5 // pred_check
      _
    $region38: #{gfk_forward.1} parent=5 // pred_check_branch
      %190 = sbr.rel (%p187) target = $region40
    $region39: #{gfk_forward.1} parent=5 // pred_region
      %s191 = ssub.s32 %s11, 1
      %p192 = scmp.lt.s32.totalorder %s16, 1
      %s193 = scalar_select %p192, %s16, 1
      %s194 = smul.addr %s193, 4
      %s195 = scalar_lea.vmem %s0, %s194
      %p196 = pneg %p37
      %p197 = pneg %p34
      %p198 = pneg %p58
      %p199 = pneg %p55
      %p200 = pneg %p79
      %p201 = pneg %p76
      %p202 = pneg %p100
      %p203 = pneg %p97
      %p204 = pneg %p121
      %p205 = pneg %p118
      %p206 = pneg %p147
      %p207 = pneg %p144
      %p208 = scmp.lt.s32.totalorder %s16, 1
      %s209 = scalar_select %p208, %s16, 1
      %s210 = smul.addr %s209, 8
      %s211 = scalar_lea.vmem %s5, %s210
      %p212 = scmp.lt.s32.totalorder %s16, 1
      %s213 = scalar_select %p212, %s16, 1
      %s214 = smul.addr %s213, 4
      %s215 = scalar_lea.vmem %s0, %s214
      %p216 = scmp.lt.s32.totalorder %s16, 1
      %s217 = scalar_select %p216, %s16, 1
      %s218 = smul.addr %s217, 8
      %s219 = scalar_lea.vmem %s5, %s218
      %v221 = vld [vmem:[%s215] sm:$0xf]
      %v222 = vunpack.c.l.bf16 %v221
      %v223 = vld [vmem:[%s1] sm:$0x1]
      %v225 = vperm.slane %v223, 0
      %v227 = vmul.f32 %v222, %v225
      %229 = vrot.lane.b32.xlu0 %v227, 96
      %v230 = vpop.permute.xlu0 %229
      %v232 = vadd.f32 %v227, %v230
      %233 = vrot.lane.b32.xlu0 %v227, 64
      %v234 = vpop.permute.xlu0 %233
      %v236 = vadd.f32 %v232, %v234
      %237 = vrot.lane.b32.xlu0 %v227, 32
      %v238 = vpop.permute.xlu0 %237
      %v240 = vadd.f32 %v236, %v238
      %v241 = vpack.c.bf16 %v240, %v240
      %v242 = vld [vmem:[%s2] sm:$0xf]
      %v243 = vld [vmem:[%s2 + $0x4] sm:$0xf]
      %v244 = vld [vmem:[%s2 + $0x8] sm:$0xf]
      %v245 = vld [vmem:[%s2 + $0xc] sm:$0xf]
      %v250 = vunpack.c.l.b16 %v242
      %v251 = vunpack.c.l.b16 %v243
      %v252 = vunpack.c.l.b16 %v244
      %v253 = vunpack.c.l.b16 %v245
      %v254 = vpack.c.b16 %v251, %v250
      %v255 = vpack.c.b16 %v253, %v252
      %vm258 = vcmask 261120
      %v260 = vsel %vm258, %v241, 0
      %262 = vmatpush.bf16.msra.mxu0 0
      %263 = vmatpush.bf16.msra.mxu0 0
      %264 = vmatpush.bf16.msra.mxu0 0
      %265 = vmatpush.bf16.msra.mxu0 0
      %266 = vmatpush.bf16.msra.mxu0 0
      %267 = vmatpush.bf16.msra.mxu0 0
      %268 = vmatpush.bf16.msra.mxu0 %v255
      %269 = vmatpush.bf16.msra.mxu0 %v254
      %270 = vmatmul.bf16.gmra.mxu0 %v260
      %v271 = vpop.f32.mrf.mxu0
      %v272 = vadd.f32 0.0, %v271
      %v273 = vpop.f32.mrf.mxu0
      %274 = vdwg.mxu0
      %v275 = vmax.f32 %v272, 0.0
      %v276 = vpack.c.bf16 %v275, %v275
      %v277 = vld [vmem:[%s3] sm:$0xf]
      %v278 = vld [vmem:[%s3 + $0x4] sm:$0xf]
      %v279 = vld [vmem:[%s3 + $0x8] sm:$0xf]
      %v280 = vld [vmem:[%s3 + $0xc] sm:$0xf]
      %v281 = vld [vmem:[%s3 + $0x10] sm:$0xf]
      %v282 = vld [vmem:[%s3 + $0x14] sm:$0xf]
      %v283 = vld [vmem:[%s3 + $0x18] sm:$0xf]
      %v284 = vld [vmem:[%s3 + $0x1c] sm:$0xf]
      %v285 = vld [vmem:[%s3 + $0x20] sm:$0xf]
      %v286 = vld [vmem:[%s3 + $0x24] sm:$0xf]
      %v287 = vld [vmem:[%s3 + $0x28] sm:$0xf]
      %v288 = vld [vmem:[%s3 + $0x2c] sm:$0xf]
      %v289 = vld [vmem:[%s3 + $0x30] sm:$0xf]
      %v290 = vld [vmem:[%s3 + $0x34] sm:$0xf]
      %v291 = vld [vmem:[%s3 + $0x38] sm:$0xf]
      %v292 = vld [vmem:[%s3 + $0x3c] sm:$0xf]
      %v309 = vunpack.c.l.b16 %v277
      %v310 = vunpack.c.l.b16 %v278
      %v311 = vunpack.c.l.b16 %v279
      %v312 = vunpack.c.l.b16 %v280
      %v313 = vunpack.c.l.b16 %v281
      %v314 = vunpack.c.l.b16 %v282
      %v315 = vunpack.c.l.b16 %v283
      %v316 = vunpack.c.l.b16 %v284
      %v317 = vunpack.c.l.b16 %v285
      %v318 = vunpack.c.l.b16 %v286
      %v319 = vunpack.c.l.b16 %v287
      %v320 = vunpack.c.l.b16 %v288
      %v321 = vunpack.c.l.b16 %v289
      %v322 = vunpack.c.l.b16 %v290
      %v323 = vunpack.c.l.b16 %v291
      %v324 = vunpack.c.l.b16 %v292
      %v325 = vpack.c.b16 %v310, %v309
      %v326 = vpack.c.b16 %v312, %v311
      %v327 = vpack.c.b16 %v314, %v313
      %v328 = vpack.c.b16 %v316, %v315
      %v329 = vpack.c.b16 %v318, %v317
      %v330 = vpack.c.b16 %v320, %v319
      %v331 = vpack.c.b16 %v322, %v321
      %v332 = vpack.c.b16 %v324, %v323
      %341 = vmatpush.bf16.msra.mxu0 %v332
      %342 = vmatpush.bf16.msra.mxu0 %v331
      %343 = vmatpush.bf16.msra.mxu0 %v330
      %344 = vmatpush.bf16.msra.mxu0 %v329
      %345 = vmatpush.bf16.msra.mxu0 %v328
      %346 = vmatpush.bf16.msra.mxu0 %v327
      %347 = vmatpush.bf16.msra.mxu0 %v326
      %348 = vmatpush.bf16.msra.mxu0 %v325
      %349 = vmatmul.bf16.gmra.mxu0 %v276
      %v350 = vpop.f32.mrf.mxu0
      %v351 = vadd.f32 %v275, %v350
      %v352 = vpop.f32.mrf.mxu0
      %353 = vdwg.mxu0
      %v354 = vmax.f32 %v351, 0.0
      %v355 = vpack.c.bf16 %v354, %v354
      %v356 = vld [vmem:[%s4] sm:$0xf]
      %v357 = vld [vmem:[%s4 + $0x4] sm:$0xf]
      %v358 = vld [vmem:[%s4 + $0x8] sm:$0xf]
      %v359 = vld [vmem:[%s4 + $0xc] sm:$0xf]
      %v360 = vld [vmem:[%s4 + $0x10] sm:$0xf]
      %v361 = vld [vmem:[%s4 + $0x14] sm:$0xf]
      %v362 = vld [vmem:[%s4 + $0x18] sm:$0xf]
      %v363 = vld [vmem:[%s4 + $0x1c] sm:$0xf]
      %v364 = vld [vmem:[%s4 + $0x20] sm:$0xf]
      %v365 = vld [vmem:[%s4 + $0x24] sm:$0xf]
      %v366 = vld [vmem:[%s4 + $0x28] sm:$0xf]
      %v367 = vld [vmem:[%s4 + $0x2c] sm:$0xf]
      %v368 = vld [vmem:[%s4 + $0x30] sm:$0xf]
      %v369 = vld [vmem:[%s4 + $0x34] sm:$0xf]
      %v370 = vld [vmem:[%s4 + $0x38] sm:$0xf]
      %v371 = vld [vmem:[%s4 + $0x3c] sm:$0xf]
      %v388 = vunpack.c.l.b16 %v356
      %v389 = vunpack.c.l.b16 %v357
      %v390 = vunpack.c.l.b16 %v358
      %v391 = vunpack.c.l.b16 %v359
      %v392 = vunpack.c.l.b16 %v360
      %v393 = vunpack.c.l.b16 %v361
      %v394 = vunpack.c.l.b16 %v362
      %v395 = vunpack.c.l.b16 %v363
      %v396 = vunpack.c.l.b16 %v364
      %v397 = vunpack.c.l.b16 %v365
      %v398 = vunpack.c.l.b16 %v366
      %v399 = vunpack.c.l.b16 %v367
      %v400 = vunpack.c.l.b16 %v368
      %v401 = vunpack.c.l.b16 %v369
      %v402 = vunpack.c.l.b16 %v370
      %v403 = vunpack.c.l.b16 %v371
      %v404 = vpack.c.b16 %v389, %v388
      %v405 = vpack.c.b16 %v391, %v390
      %v406 = vpack.c.b16 %v393, %v392
      %v407 = vpack.c.b16 %v395, %v394
      %v408 = vpack.c.b16 %v397, %v396
      %v409 = vpack.c.b16 %v399, %v398
      %v410 = vpack.c.b16 %v401, %v400
      %v411 = vpack.c.b16 %v403, %v402
      %420 = vmatpush.bf16.msra.mxu0 %v411
      %421 = vmatpush.bf16.msra.mxu0 %v410
      %422 = vmatpush.bf16.msra.mxu0 %v409
      %423 = vmatpush.bf16.msra.mxu0 %v408
      %424 = vmatpush.bf16.msra.mxu0 %v407
      %425 = vmatpush.bf16.msra.mxu0 %v406
      %426 = vmatpush.bf16.msra.mxu0 %v405
      %427 = vmatpush.bf16.msra.mxu0 %v404
      %428 = vmatmul.bf16.gmra.mxu0 %v355
      %v429 = vpop.f32.mrf.mxu0
      %v430 = vadd.f32 0.0, %v429
      %v431 = vpop.f32.mrf.mxu0
      %432 = vdwg.mxu0
      %vm433 = vcmask 64512
      %434 = vst.msk [vmem:[%s219] sm:$0xff] %vm433, %v430
      %p435 = scmp.lt.s32.totalorder %s16, 1
      %s436 = scalar_select %p435, %s16, 1
      %s437 = smul.addr %s436, 8
      %s438 = scalar_lea.vmem %s5, %s437
      // Predicated region
      $region41: #{gfk_forward.1} parent=39 // pred_check
        %p439 = pneg %p144
      $region42: #{gfk_forward.1} parent=39 // pred_check_branch
        %441 = sbr.rel (%p439) target = $region44
      $region43: #{gfk_forward.1} parent=39 // pred_region
        _
      $region44: #{gfk_forward.1} parent=39 // pred_fallthru
        _
    $region40: #{gfk_forward.1} parent=5 // pred_fallthru
      _
    %p442 = scmp.le.s32.totalorder 2, %s11
    // Predicated region
    $region45: #{gfk_forward.1} parent=5 // pred_check
      %p443 = pneg %p442
    $region46: #{gfk_forward.1} parent=5 // pred_check_branch
      %445 = sbr.rel (%p443) target = $region48
    $region47: #{gfk_forward.1} parent=5 // pred_region
      %s446 = ssub.s32 %s11, 2
      // Predicated region
      $region49: #{gfk_forward.1} parent=47 // pred_check
        %p447 = pneg %p150
      $region50: #{gfk_forward.1} parent=47 // pred_check_branch
        %449 = sbr.rel (%p447) target = $region52
      $region51: #{gfk_forward.1} parent=47 // pred_region
        %p450 = scmp.lt.s32.totalorder %s17, 1
        %s451 = scalar_select %p450, %s17, 1
        %s452 = smul.addr %s451, 8
        %s453 = scalar_lea.vmem %s5, %s452
      $region52: #{gfk_forward.1} parent=47 // pred_fallthru
        _
    $region48: #{gfk_forward.1} parent=5 // pred_fallthru
      _
  $region6: #{gfk_forward.1} parent=0 // loop_footer
    %s15 = sadd.s32 1, %s11
  $region7: #{gfk_forward.1} parent=0 // loop_footer_branch
    %10 = sbr.rel target = $region3
  $region8: #{gfk_forward.1} parent=0 // loop_exit
    _

</llo_original>
